<compile_context>
chip_gen: v7x
topology: tpu7x:2x2x1
jax: 0.10.0
libtpu: 0.0.40
codegen_flags: <defaults>
</compile_context>

<pallas_src>
import functools

import jax
import jax.numpy as jnp
from jax.experimental import pallas as pl
from jax.experimental.pallas import tpu as pltpu

LANE = 128  # TPU lane width.


def _round_up(x, m):
    return (x + m - 1) // m * m


def prepare_fused_weight(w1, w2, *, compute_dtype=jnp.float32):
    """One-time weight prep (parameter-load time, NOT per forward).

    w1: [n, m], w2: [k, n] in PyTorch Linear [out, in] layout.
    Returns (wc, k):
      wc: [m, k_out] with Wc = W1.T @ W2.T.  k_out == k unless k > 128 and
          k % 128 != 0 (only then is the output dim zero-padded to a lane
          multiple and sliced in the wrapper).
      k : real output feature count, derived from w2 (not user-supplied).
    """
    n, m = w1.shape
    k, n_ = w2.shape
    assert n == n_, "w1/w2 inner dims disagree"
    wc = jnp.dot(
        w1.T.astype(jnp.float32),
        w2.T.astype(jnp.float32),
        precision=jax.lax.Precision.HIGHEST,
        preferred_element_type=jnp.float32,
    )  # [m, k]
    if k > LANE and k % LANE != 0:
        wc = jnp.pad(wc, ((0, 0), (0, _round_up(k, LANE) - k)))
    return wc.astype(compute_dtype), k


def toy_model_kernel(x_ref, wc_ref, o_ref):
    # x_ref:  [TB, m]     VMEM activation tile (double-buffered across grid steps)
    # wc_ref: [m,  k_out] VMEM fused weight (single-buffered, resident across steps)
    # o_ref:  [TB, k_out] VMEM output tile (k_out == real k for small k: no padding)
    x = x_ref[...].astype(wc_ref.dtype)  # in-kernel cast; no-op on the f32 path
    o_ref[...] = jnp.dot(
        x, wc_ref[...], preferred_element_type=jnp.float32
    ).astype(o_ref.dtype)


def _pick_batch_tile(B, requested, weight_itemsize):
    # bf16 needs (16,128) min tiles; f32 needs (8,128).
    sub = 16 if weight_itemsize == 2 else 8
    tb = max(sub, min(requested, _round_up(B, sub)))
    tb = _round_up(tb, sub)
    steps = -(-B // tb)
    if steps > 1 and steps % 2 == 1:
        # Even step count so the "parallel" batch axis splits evenly across the
        # two v7x TensorCores (no effect on single-TC v5e/v6e).
        steps += 1
        tb = _round_up(-(-B // steps), sub)
    return tb


@functools.partial(jax.jit, static_argnames=("k", "tb"))
def toy_model_forward(x, wc, *, k=None, tb=512):
    """x: [B, m]; wc: [m, k_out] from prepare_fused_weight; returns [B, k]."""
    B, m = x.shape
    m_, k_out = wc.shape
    assert m == m_, "activation/weight feature dims disagree"
    if k is None:
        k = k_out
    out_dtype = x.dtype

    tb = _pick_batch_tile(B, tb, jnp.dtype(wc.dtype).itemsize)
    grid = (pl.cdiv(B, tb),)

    bpe_x = jnp.dtype(x.dtype).itemsize
    bpe_w = jnp.dtype(wc.dtype).itemsize
    bpe_o = jnp.dtype(out_dtype).itemsize
    # Double-buffered activation + output tiles, single-buffered resident weight.
    vmem_need = 2 * tb * m * bpe_x + m * k_out * bpe_w + 2 * tb * k_out * bpe_o
    vmem_limit = int(min(max(4 * vmem_need, 16 << 20), 64 << 20))

    cost = pl.CostEstimate(
        flops=2 * B * m * k_out,
        transcendentals=0,
        bytes_accessed=B * m * bpe_x + m * k_out * bpe_w + B * k_out * bpe_o,
    )

    out = pl.pallas_call(
        toy_model_kernel,
        out_shape=jax.ShapeDtypeStruct((B, k_out), out_dtype),
        grid=grid,
        in_specs=[
            # Batch-tiled activations (double-buffered by the pipeline).
            pl.BlockSpec((tb, m), lambda i: (i, 0)),
            # Fused weight: constant index_map -> VMEM-resident; one buffer only.
            pl.BlockSpec((m, k_out), lambda i: (0, 0),
                         pipeline_mode=pl.Buffered(1)),
        ],
        out_specs=pl.BlockSpec((tb, k_out), lambda i: (i, 0)),
        compiler_params=pltpu.CompilerParams(
            dimension_semantics=("parallel",),  # independent batch tiles (megacore)
            vmem_limit_bytes=vmem_limit,
        ),
        cost_estimate=cost,
    )(x, wc)

    if k != k_out:
        # Only reachable when k > 128 forced lane padding in prepare_fused_weight.
        out = out[:, :k]
    return out


if __name__ == "__main__":
    # ToyModel(m=32, n=64, k=16); batch sized so the grid has 2 even tiles of 512.
    B, M, N, K = 1024, 32, 64, 16

    key = jax.random.PRNGKey(0)
    kx, k1, k2 = jax.random.split(key, 3)

    x = jax.random.normal(kx, (B, M), dtype=jnp.float32)
    # Deterministic parameter init (PyTorch Linear weight shape: [out, in]).
    bound1 = 1.0 / (M ** 0.5)
    bound2 = 1.0 / (N ** 0.5)
    w1 = jax.random.uniform(k1, (N, M), minval=-bound1, maxval=bound1, dtype=jnp.float32)
    w2 = jax.random.uniform(k2, (K, N), minval=-bound2, maxval=bound2, dtype=jnp.float32)

    # One-time weight prep (fuse + transpose); k derived from weight metadata.
    wc, k_real = prepare_fused_weight(w1, w2)

    out = toy_model_forward(x, wc, k=k_real, tb=512)
    out = jax.block_until_ready(out)

    # Correctness check against plain-JAX reference of the PyTorch forward.
    ref = (x @ w1.T) @ w2.T
    assert out.shape == (B, K)
    assert jnp.allclose(out, ref, atol=1e-3, rtol=1e-3), (
        float(jnp.max(jnp.abs(out - ref))))

    print("KERNEL_OK")
</pallas_src>

<mosaic_0001>
module attributes {stable_mosaic.version = 11 : i64} {
  func.func @toy_model_kernel(%arg0: i32, %arg1: memref<512x32xf32, #tpu.memory_space<vmem>>, %arg2: memref<32x16xf32, #tpu.memory_space<vmem>>, %arg3: memref<512x16xf32, #tpu.memory_space<vmem>>) attributes {dimension_semantics = [#tpu.dimension_semantics<parallel>], iteration_bounds = array<i64: 2>, scalar_prefetch = 0 : i64, scratch_operands = 0 : i64, tpu.core_type = #tpu.core_type<tc>, window_params = [{transform_indices = @transform_0, window_bounds = array<i64: 512, 32>}, {pipeline_mode = #tpu.pipeline_mode<synchronous>, transform_indices = @transform_1, window_bounds = array<i64: 32, 16>}, {transform_indices = @transform_2, window_bounds = array<i64: 512, 16>}]} {
    %c0 = arith.constant 0 : index
    %c0_0 = arith.constant 0 : index
    %0 = vector.load %arg1[%c0, %c0_0] : memref<512x32xf32, #tpu.memory_space<vmem>>, vector<512x32xf32>
    %c0_1 = arith.constant 0 : index
    %c0_2 = arith.constant 0 : index
    %1 = vector.load %arg2[%c0_1, %c0_2] : memref<32x16xf32, #tpu.memory_space<vmem>>, vector<32x16xf32>
    %cst = arith.constant dense<0.000000e+00> : vector<512x16xf32>
    %2 = tpu.matmul %0, %1, %cst {dimension_numbers = #tpu.dot_dimension_numbers<[1], [0], [0], [1], [0, 0, 1, 1], [], []>} : vector<512x32xf32>, vector<32x16xf32>, vector<512x16xf32> -> vector<512x16xf32>
    %c0_3 = arith.constant 0 : index
    %c0_4 = arith.constant 0 : index
    %3 = vector.load %arg3[%c0_3, %c0_4] : memref<512x16xf32, #tpu.memory_space<vmem>>, vector<512x16xf32>
    tpu.vector_store %arg3[%c0_3, %c0_4], %2 {strides = array<i32>} : memref<512x16xf32, #tpu.memory_space<vmem>>, vector<512x16xf32>,
    return
  }
  func.func @transform_0(%arg0: i32) -> (i32, i32) {
    %c0_i32 = arith.constant 0 : i32
    %c0_i32_0 = arith.constant 0 : i32
    return %arg0, %c0_i32 : i32, i32
  }
  func.func @transform_1(%arg0: i32) -> (i32, i32) {
    %c0_i32 = arith.constant 0 : i32
    %c0_i32_0 = arith.constant 0 : i32
    %c0_i32_1 = arith.constant 0 : i32
    return %c0_i32, %c0_i32_0 : i32, i32
  }
  func.func @transform_2(%arg0: i32) -> (i32, i32) {
    %c0_i32 = arith.constant 0 : i32
    %c0_i32_0 = arith.constant 0 : i32
    return %arg0, %c0_i32 : i32, i32
  }
}

</mosaic_0001>

<llo_original>
// kernel: toy_model_forward.1
$region0: #{toy_model_forward.1}
  #allocation0 [shape = 'u32[]', space=smem, size = 0x4, offset = 0x4, fixed_abs, tag = 'smem constant byte address 0x4 - core index']
  #allocation1 [shape = 'u32[144,128]{1,0:T(1,128)}', space=vmem, size = 0x12000, scoped, tag = 'internal scratch']
  %s0 = inlined_call_operand.vmem [shape: f32[1024,32], index: 0, kind: input, shape index: {}]
  %s1 = inlined_call_operand.vmem [shape: f32[32,16], index: 1, kind: input, shape index: {}]
  %s2 = inlined_call_operand.vmem [shape: f32[1024,16], index: 2, kind: output, shape index: {}]
  %s3 = sld [smem:[#allocation0]]
  $region41: #{toy_model_forward.1} parent=0
    _
  %s5 = ssub.s32 1, %s3
  %s6 = scalar_select 0, %s5, %s3
  loop: start=0, step=1, limit=4
  $region2: #{toy_model_forward.1} parent=0 // loop_pre_header
    _
  $region3: #{toy_model_forward.1} parent=0 // loop_header
    %s8 = sphi 0, %s12
    %p9 = scmp.ge.s32.totalorder %s8, 4
    %s18 = sphi 0, %s20
    %s21 = sphi 0, %s18
    %s22 = sphi 0, %s21
    %s38 = sphi 0, %s22
    %s42 = sphi 0, %s42
    %s44 = sphi 0, %s42
    %s45 = sphi 0, %s44
    %s59 = sphi 0, %s45
    %s65 = sphi 0, %s67
    %s68 = sphi 0, %s65
    %s69 = sphi 0, %s68
    %s85 = sphi 0, %s69
  $region4: #{toy_model_forward.1} parent=0 // loop_header_branch
    %11 = sbr.rel (%p9) target = $region8
  $region5: #{toy_model_forward.1} parent=0 // loop_body
    %s13 = ssub.s32 %s8, 1
    %s14 = ssub.s32 %s8, 2
    %s15 = sadd.s32 %s8, 1
    %s16 = ssub.s32 %s8, %s15
    %p17 = scmp.eq.s32.totalorder %s16, 0
    %s19 = sadd.s32 %s18, 1
    %s20 = scalar_select %p17, %s18, %s19
    %p23 = pneg %p17
    %p24 = scmp.eq.s32.totalorder %s8, 1
    %p25 = por %p23, %p24
    %p26 = scmp.ne.s32.totalorder %s18, %s21
    %p27 = scmp.eq.s32.totalorder %s8, 0
    %p28 = por %p26, %p27
    %p29 = scmp.ne.s32.totalorder %s18, %s21
    %p30 = scmp.eq.s32.totalorder %s13, 1
    %p31 = por %p29, %p30
    %p32 = scmp.ne.s32.totalorder %s21, %s22
    %p33 = scmp.eq.s32.totalorder %s13, 0
    %p34 = por %p32, %p33
    %p35 = scmp.ne.s32.totalorder %s21, %s22
    %p36 = scmp.eq.s32.totalorder %s14, 1
    %p37 = por %p35, %p36
    %p39 = scmp.ne.s32.totalorder %s22, %s38
    %p40 = scmp.eq.s32.totalorder %s14, 0
    %p41 = por %p39, %p40
    %s43 = sadd.s32 %s42, 1
    %p46 = scmp.eq.s32.totalorder %s8, 1
    %p47 = scmp.ne.s32.totalorder %s42, %s44
    %p48 = scmp.eq.s32.totalorder %s8, 0
    %p49 = por %p47, %p48
    %p50 = scmp.ne.s32.totalorder %s42, %s44
    %p51 = scmp.eq.s32.totalorder %s13, 1
    %p52 = por %p50, %p51
    %p53 = scmp.ne.s32.totalorder %s44, %s45
    %p54 = scmp.eq.s32.totalorder %s13, 0
    %p55 = por %p53, %p54
    %p56 = scmp.ne.s32.totalorder %s44, %s45
    %p57 = scmp.eq.s32.totalorder %s14, 1
    %p58 = por %p56, %p57
    %p60 = scmp.ne.s32.totalorder %s45, %s59
    %p61 = scmp.eq.s32.totalorder %s14, 0
    %p62 = por %p60, %p61
    %s63 = ssub.s32 %s8, %s15
    %p64 = scmp.eq.s32.totalorder %s63, 0
    %s66 = sadd.s32 %s65, 1
    %s67 = scalar_select %p64, %s65, %s66
    %p70 = pneg %p64
    %p71 = scmp.eq.s32.totalorder %s8, 1
    %p72 = por %p70, %p71
    %p73 = scmp.ne.s32.totalorder %s65, %s68
    %p74 = scmp.eq.s32.totalorder %s8, 0
    %p75 = por %p73, %p74
    %p76 = scmp.ne.s32.totalorder %s65, %s68
    %p77 = scmp.eq.s32.totalorder %s13, 1
    %p78 = por %p76, %p77
    %p79 = scmp.ne.s32.totalorder %s68, %s69
    %p80 = scmp.eq.s32.totalorder %s13, 0
    %p81 = por %p79, %p80
    %p82 = scmp.ne.s32.totalorder %s68, %s69
    %p83 = scmp.eq.s32.totalorder %s14, 1
    %p84 = por %p82, %p83
    %p86 = scmp.ne.s32.totalorder %s69, %s85
    %p87 = scmp.eq.s32.totalorder %s14, 0
    %p88 = por %p86, %p87
    %p89 = scmp.le.s32.totalorder 1, %s8
    %p90 = scmp.lt.s32.totalorder %s8, 3
    %p91 = pnand %p89, %p90
    %p92 = pneg %p91
    // Predicated region
    $region9: #{toy_model_forward.1} parent=5 // pred_check
      _
    $region10: #{toy_model_forward.1} parent=5 // pred_check_branch
      %94 = sbr.rel (%p91) target = $region12
    $region11: #{toy_model_forward.1} parent=5 // pred_region
      %s95 = ssub.s32 %s8, 1
      // Predicated region
      $region13: #{toy_model_forward.1} parent=11 // pred_check
        %p96 = pneg %p55
      $region14: #{toy_model_forward.1} parent=11 // pred_check_branch
        %98 = sbr.rel (%p96) target = $region16
      $region15: #{toy_model_forward.1} parent=11 // pred_region
        _
      $region16: #{toy_model_forward.1} parent=11 // pred_fallthru
        _
    $region12: #{toy_model_forward.1} parent=5 // pred_fallthru
      _
    %p99 = scmp.lt.s32.totalorder %s8, 2
    // Predicated region
    $region17: #{toy_model_forward.1} parent=5 // pred_check
      %p100 = pneg %p99
    $region18: #{toy_model_forward.1} parent=5 // pred_check_branch
      %102 = sbr.rel (%p100) target = $region20
    $region19: #{toy_model_forward.1} parent=5 // pred_region
      // Predicated region
      $region21: #{toy_model_forward.1} parent=19 // pred_check
        %p103 = pneg %p28
      $region22: #{toy_model_forward.1} parent=19 // pred_check_branch
        %105 = sbr.rel (%p103) target = $region24
      $region23: #{toy_model_forward.1} parent=19 // pred_region
        %s106 = smul.u32 64, %s8
        %p107 = scmp.lt.s32.totalorder %s106, 127
        %s108 = scalar_select %p107, %s106, 127
        %s109 = smul.addr %s108, 8
        %s110 = scalar_lea.vmem %s0, %s109
        %s111 = smul.u32 64, %s8
      $region24: #{toy_model_forward.1} parent=19 // pred_fallthru
        _
    $region20: #{toy_model_forward.1} parent=5 // pred_fallthru
      _
    %p112 = scmp.le.s32.totalorder 1, %s8
    %p113 = scmp.lt.s32.totalorder %s8, 3
    %p114 = pnand %p112, %p113
    %p115 = pneg %p114
    // Predicated region
    $region25: #{toy_model_forward.1} parent=5 // pred_check
      _
    $region26: #{toy_model_forward.1} parent=5 // pred_check_branch
      %117 = sbr.rel (%p114) target = $region28
    $region27: #{toy_model_forward.1} parent=5 // pred_region
      %s118 = ssub.s32 %s8, 1
      %s119 = smul.u32 64, %s13
      %p120 = scmp.lt.s32.totalorder %s119, 127
      %s121 = scalar_select %p120, %s119, 127
      %s122 = smul.addr %s121, 8
      %s123 = scalar_lea.vmem %s0, %s122
      %p124 = pneg %p34
      %p125 = pneg %p31
      %p126 = pneg %p55
      %p127 = pneg %p52
      %p128 = pneg %p81
      %p129 = pneg %p78
      %s130 = smul.u32 64, %s13
      %p131 = scmp.lt.s32.totalorder %s130, 127
      %s132 = scalar_select %p131, %s130, 127
      %s133 = smul.addr %s132, 8
      %s134 = scalar_lea.vmem %s2, %s133
      %s135 = smul.u32 64, %s13
      %p136 = scmp.lt.s32.totalorder %s135, 127
      %s137 = scalar_select %p136, %s135, 127
      %s138 = smul.addr %s137, 8
      %s139 = scalar_lea.vmem %s0, %s138
      %s140 = smul.u32 64, %s13
      %s141 = smul.u32 64, %s13
      %p142 = scmp.lt.s32.totalorder %s141, 127
      %s143 = scalar_select %p142, %s141, 127
      %s144 = smul.addr %s143, 8
      %s145 = scalar_lea.vmem %s2, %s144
      %s146 = smul.u32 64, %s13
      %v147 = vld [vmem:[%s139] sm:$0xff]
      %v148 = vld [vmem:[%s139 + $0x8] sm:$0xff]
      %v149 = vld [vmem:[%s139 + $0x10] sm:$0xff]
      %v150 = vld [vmem:[%s139 + $0x18] sm:$0xff]
      %v151 = vld [vmem:[%s139 + $0x20] sm:$0xff]
      %v152 = vld [vmem:[%s139 + $0x28] sm:$0xff]
      %v153 = vld [vmem:[%s139 + $0x30] sm:$0xff]
      %v154 = vld [vmem:[%s139 + $0x38] sm:$0xff]
      %v155 = vld [vmem:[%s139 + $0x40] sm:$0xff]
      %v156 = vld [vmem:[%s139 + $0x48] sm:$0xff]
      %v157 = vld [vmem:[%s139 + $0x50] sm:$0xff]
      %v158 = vld [vmem:[%s139 + $0x58] sm:$0xff]
      %v159 = vld [vmem:[%s139 + $0x60] sm:$0xff]
      %v160 = vld [vmem:[%s139 + $0x68] sm:$0xff]
      %v161 = vld [vmem:[%s139 + $0x70] sm:$0xff]
      %v162 = vld [vmem:[%s139 + $0x78] sm:$0xff]
      %v163 = vld [vmem:[%s139 + $0x80] sm:$0xff]
      %v164 = vld [vmem:[%s139 + $0x88] sm:$0xff]
      %v165 = vld [vmem:[%s139 + $0x90] sm:$0xff]
      %v166 = vld [vmem:[%s139 + $0x98] sm:$0xff]
      %v167 = vld [vmem:[%s139 + $0xa0] sm:$0xff]
      %v168 = vld [vmem:[%s139 + $0xa8] sm:$0xff]
      %v169 = vld [vmem:[%s139 + $0xb0] sm:$0xff]
      %v170 = vld [vmem:[%s139 + $0xb8] sm:$0xff]
      %v171 = vld [vmem:[%s139 + $0xc0] sm:$0xff]
      %v172 = vld [vmem:[%s139 + $0xc8] sm:$0xff]
      %v173 = vld [vmem:[%s139 + $0xd0] sm:$0xff]
      %v174 = vld [vmem:[%s139 + $0xd8] sm:$0xff]
      %v175 = vld [vmem:[%s139 + $0xe0] sm:$0xff]
      %v176 = vld [vmem:[%s139 + $0xe8] sm:$0xff]
      %v177 = vld [vmem:[%s139 + $0xf0] sm:$0xff]
      %v178 = vld [vmem:[%s139 + $0xf8] sm:$0xff]
      %v179 = vld [vmem:[%s139 + $0x100] sm:$0xff]
      %v180 = vld [vmem:[%s139 + $0x108] sm:$0xff]
      %v181 = vld [vmem:[%s139 + $0x110] sm:$0xff]
      %v182 = vld [vmem:[%s139 + $0x118] sm:$0xff]
      %v183 = vld [vmem:[%s139 + $0x120] sm:$0xff]
      %v184 = vld [vmem:[%s139 + $0x128] sm:$0xff]
      %v185 = vld [vmem:[%s139 + $0x130] sm:$0xff]
      %v186 = vld [vmem:[%s139 + $0x138] sm:$0xff]
      %v187 = vld [vmem:[%s139 + $0x140] sm:$0xff]
      %v188 = vld [vmem:[%s139 + $0x148] sm:$0xff]
      %v189 = vld [vmem:[%s139 + $0x150] sm:$0xff]
      %v190 = vld [vmem:[%s139 + $0x158] sm:$0xff]
      %v191 = vld [vmem:[%s139 + $0x160] sm:$0xff]
      %v192 = vld [vmem:[%s139 + $0x168] sm:$0xff]
      %v193 = vld [vmem:[%s139 + $0x170] sm:$0xff]
      %v194 = vld [vmem:[%s139 + $0x178] sm:$0xff]
      %v195 = vld [vmem:[%s139 + $0x180] sm:$0xff]
      %v196 = vld [vmem:[%s139 + $0x188] sm:$0xff]
      %v197 = vld [vmem:[%s139 + $0x190] sm:$0xff]
      %v198 = vld [vmem:[%s139 + $0x198] sm:$0xff]
      %v199 = vld [vmem:[%s139 + $0x1a0] sm:$0xff]
      %v200 = vld [vmem:[%s139 + $0x1a8] sm:$0xff]
      %v201 = vld [vmem:[%s139 + $0x1b0] sm:$0xff]
      %v202 = vld [vmem:[%s139 + $0x1b8] sm:$0xff]
      %v203 = vld [vmem:[%s139 + $0x1c0] sm:$0xff]
      %v204 = vld [vmem:[%s139 + $0x1c8] sm:$0xff]
      %v205 = vld [vmem:[%s139 + $0x1d0] sm:$0xff]
      %v206 = vld [vmem:[%s139 + $0x1d8] sm:$0xff]
      %v207 = vld [vmem:[%s139 + $0x1e0] sm:$0xff]
      %v208 = vld [vmem:[%s139 + $0x1e8] sm:$0xff]
      %v209 = vld [vmem:[%s139 + $0x1f0] sm:$0xff]
      %v210 = vld [vmem:[%s139 + $0x1f8] sm:$0xff]
      %v211 = vld [vmem:[%s1] sm:$0xff]
      %v212 = vld [vmem:[%s1 + $0x8] sm:$0xff]
      %v213 = vld [vmem:[%s1 + $0x10] sm:$0xff]
      %v214 = vld [vmem:[%s1 + $0x18] sm:$0xff]
      %vm215 = vcmask 261120
      %v217 = vsel %vm215, %v147, 0
      %v220 = vsel %vm215, %v148, 0
      %v223 = vsel %vm215, %v149, 0
      %v226 = vsel %vm215, %v150, 0
      %v229 = vsel %vm215, %v151, 0
      %v232 = vsel %vm215, %v152, 0
      %v235 = vsel %vm215, %v153, 0
      %v238 = vsel %vm215, %v154, 0
      %v241 = vsel %vm215, %v155, 0
      %v244 = vsel %vm215, %v156, 0
      %v247 = vsel %vm215, %v157, 0
      %v250 = vsel %vm215, %v158, 0
      %v253 = vsel %vm215, %v159, 0
      %v256 = vsel %vm215, %v160, 0
      %v259 = vsel %vm215, %v161, 0
      %v262 = vsel %vm215, %v162, 0
      %v265 = vsel %vm215, %v163, 0
      %v268 = vsel %vm215, %v164, 0
      %v271 = vsel %vm215, %v165, 0
      %v274 = vsel %vm215, %v166, 0
      %v277 = vsel %vm215, %v167, 0
      %v280 = vsel %vm215, %v168, 0
      %v283 = vsel %vm215, %v169, 0
      %v286 = vsel %vm215, %v170, 0
      %v289 = vsel %vm215, %v171, 0
      %v292 = vsel %vm215, %v172, 0
      %v295 = vsel %vm215, %v173, 0
      %v298 = vsel %vm215, %v174, 0
      %v301 = vsel %vm215, %v175, 0
      %v304 = vsel %vm215, %v176, 0
      %v307 = vsel %vm215, %v177, 0
      %v310 = vsel %vm215, %v178, 0
      %v313 = vsel %vm215, %v179, 0
      %v316 = vsel %vm215, %v180, 0
      %v319 = vsel %vm215, %v181, 0
      %v322 = vsel %vm215, %v182, 0
      %v325 = vsel %vm215, %v183, 0
      %v328 = vsel %vm215, %v184, 0
      %v331 = vsel %vm215, %v185, 0
      %v334 = vsel %vm215, %v186, 0
      %v337 = vsel %vm215, %v187, 0
      %v340 = vsel %vm215, %v188, 0
      %v343 = vsel %vm215, %v189, 0
      %v346 = vsel %vm215, %v190, 0
      %v349 = vsel %vm215, %v191, 0
      %v352 = vsel %vm215, %v192, 0
      %v355 = vsel %vm215, %v193, 0
      %v358 = vsel %vm215, %v194, 0
      %v361 = vsel %vm215, %v195, 0
      %v364 = vsel %vm215, %v196, 0
      %v367 = vsel %vm215, %v197, 0
      %v370 = vsel %vm215, %v198, 0
      %v373 = vsel %vm215, %v199, 0
      %v376 = vsel %vm215, %v200, 0
      %v379 = vsel %vm215, %v201, 0
      %v382 = vsel %vm215, %v202, 0
      %v385 = vsel %vm215, %v203, 0
      %v388 = vsel %vm215, %v204, 0
      %v391 = vsel %vm215, %v205, 0
      %v394 = vsel %vm215, %v206, 0
      %v397 = vsel %vm215, %v207, 0
      %v400 = vsel %vm215, %v208, 0
      %v403 = vsel %vm215, %v209, 0
      %v406 = vsel %vm215, %v210, 0
      %408 = vmatprep.subr.mxu0 0.0
      %409 = vmatpush1.msra.mxu0 %v211
      %410 = vmatprep.subr.mxu0 0.0
      %411 = vmatpush1.msra.mxu0 %v212
      %412 = vmatprep.subr.mxu0 0.0
      %413 = vmatpush1.msra.mxu0 %v213
      %414 = vmatprep.subr.mxu0 0.0
      %415 = vmatpush1.msra.mxu0 %v214
      %416 = vmatprep.subr.mxu0 0.0
      %417 = vmatpush1.msra.mxu0 0.0
      %418 = vmatprep.subr.mxu0 0.0
      %419 = vmatpush1.msra.mxu0 0.0
      %420 = vmatprep.subr.mxu0 0.0
      %421 = vmatpush1.msra.mxu0 0.0
      %422 = vmatprep.subr.mxu0 0.0
      %423 = vmatpush1.msra.mxu0 0.0
      %424 = vmatprep.subr.mxu0 0.0
      %425 = vmatpush1.msra.mxu0 0.0
      %426 = vmatprep.subr.mxu0 0.0
      %427 = vmatpush1.msra.mxu0 0.0
      %428 = vmatprep.subr.mxu0 0.0
      %429 = vmatpush1.msra.mxu0 0.0
      %430 = vmatprep.subr.mxu0 0.0
      %431 = vmatpush1.msra.mxu0 0.0
      %432 = vmatprep.subr.mxu0 0.0
      %433 = vmatpush1.msra.mxu0 0.0
      %434 = vmatprep.subr.mxu0 0.0
      %435 = vmatpush1.msra.mxu0 0.0
      %436 = vmatprep.subr.mxu0 0.0
      %437 = vmatpush1.msra.mxu0 0.0
      %438 = vmatprep.subr.mxu0 0.0
      %439 = vmatpush1.msra.mxu0 0.0
      %440 = vmatprep.subr.mxu0 0.0
      %441 = vmatpush1.msra.mxu0 0.0
      %442 = vmatprep.subr.mxu0 0.0
      %443 = vmatpush1.msra.mxu0 0.0
      %444 = vmatprep.subr.mxu0 0.0
      %445 = vmatpush1.msra.mxu0 0.0
      %446 = vmatprep.subr.mxu0 0.0
      %447 = vmatpush1.msra.mxu0 0.0
      %448 = vmatprep.subr.mxu0 0.0
      %449 = vmatpush1.msra.mxu0 0.0
      %450 = vmatprep.subr.mxu0 0.0
      %451 = vmatpush1.msra.mxu0 0.0
      %452 = vmatprep.subr.mxu0 0.0
      %453 = vmatpush1.msra.mxu0 0.0
      %454 = vmatprep.subr.mxu0 0.0
      %455 = vmatpush1.msra.mxu0 0.0
      %456 = vmatprep.subr.mxu0 0.0
      %457 = vmatpush1.msra.mxu0 0.0
      %458 = vmatprep.subr.mxu0 0.0
      %459 = vmatpush1.msra.mxu0 0.0
      %460 = vmatprep.subr.mxu0 0.0
      %461 = vmatpush1.msra.mxu0 0.0
      %462 = vmatprep.subr.mxu0 0.0
      %463 = vmatpush1.msra.mxu0 0.0
      %464 = vmatprep.subr.mxu0 0.0
      %465 = vmatpush1.msra.mxu0 0.0
      %466 = vmatprep.subr.mxu0 0.0
      %467 = vmatpush1.msra.mxu0 0.0
      %468 = vmatprep.subr.mxu0 0.0
      %469 = vmatpush1.msra.mxu0 0.0
      %470 = vmatprep.subr.mxu0 0.0
      %471 = vmatpush1.msra.mxu0 0.0
      %472 = vmatprep.mubr.f32.mxu0 0.0
      %473 = vmatmul.mubr.f32.gmra.mrb[0].mxu0 %v217
      %v474 = vpop.f32.mrb[0].mxu0
      %v475 = vadd.f32 0.0, %v474
      %v476 = vpop.f32.mrb[0].mxu0
      %477 = vmatprep.mubr.f32.mxu0 0.0
      %478 = vmatmul.mubr.f32.gmra.mrb[0].mxu0 %v220
      %v479 = vpop.f32.mrb[0].mxu0
      %v480 = vadd.f32 0.0, %v479
      %v481 = vpop.f32.mrb[0].mxu0
      %482 = vmatprep.mubr.f32.mxu0 0.0
      %483 = vmatmul.mubr.f32.gmra.mrb[0].mxu0 %v223
      %v484 = vpop.f32.mrb[0].mxu0
      %v485 = vadd.f32 0.0, %v484
      %v486 = vpop.f32.mrb[0].mxu0
      %487 = vmatprep.mubr.f32.mxu0 0.0
      %488 = vmatmul.mubr.f32.gmra.mrb[0].mxu0 %v226
      %v489 = vpop.f32.mrb[0].mxu0
      %v490 = vadd.f32 0.0, %v489
      %v491 = vpop.f32.mrb[0].mxu0
      %492 = vmatprep.mubr.f32.mxu0 0.0
      %493 = vmatmul.mubr.f32.gmra.mrb[0].mxu0 %v229
      %v494 = vpop.f32.mrb[0].mxu0
      %v495 = vadd.f32 0.0, %v494
      %v496 = vpop.f32.mrb[0].mxu0
      %497 = vmatprep.mubr.f32.mxu0 0.0
      %498 = vmatmul.mubr.f32.gmra.mrb[0].mxu0 %v232
      %v499 = vpop.f32.mrb[0].mxu0
      %v500 = vadd.f32 0.0, %v499
      %v501 = vpop.f32.mrb[0].mxu0
      %502 = vmatprep.mubr.f32.mxu0 0.0
      %503 = vmatmul.mubr.f32.gmra.mrb[0].mxu0 %v235
      %v504 = vpop.f32.mrb[0].mxu0
      %v505 = vadd.f32 0.0, %v504
      %v506 = vpop.f32.mrb[0].mxu0
      %507 = vmatprep.mubr.f32.mxu0 0.0
      %508 = vmatmul.mubr.f32.gmra.mrb[0].mxu0 %v238
      %v509 = vpop.f32.mrb[0].mxu0
      %v510 = vadd.f32 0.0, %v509
      %v511 = vpop.f32.mrb[0].mxu0
      %512 = vmatprep.mubr.f32.mxu0 0.0
      %513 = vmatmul.mubr.f32.gmra.mrb[0].mxu0 %v241
      %v514 = vpop.f32.mrb[0].mxu0
      %v515 = vadd.f32 0.0, %v514
      %v516 = vpop.f32.mrb[0].mxu0
      %517 = vmatprep.mubr.f32.mxu0 0.0
      %518 = vmatmul.mubr.f32.gmra.mrb[0].mxu0 %v244
      %v519 = vpop.f32.mrb[0].mxu0
      %v520 = vadd.f32 0.0, %v519
      %v521 = vpop.f32.mrb[0].mxu0
      %522 = vmatprep.mubr.f32.mxu0 0.0
      %523 = vmatmul.mubr.f32.gmra.mrb[0].mxu0 %v247
      %v524 = vpop.f32.mrb[0].mxu0
      %v525 = vadd.f32 0.0, %v524
      %v526 = vpop.f32.mrb[0].mxu0
      %527 = vmatprep.mubr.f32.mxu0 0.0
      %528 = vmatmul.mubr.f32.gmra.mrb[0].mxu0 %v250
      %v529 = vpop.f32.mrb[0].mxu0
      %v530 = vadd.f32 0.0, %v529
      %v531 = vpop.f32.mrb[0].mxu0
      %532 = vmatprep.mubr.f32.mxu0 0.0
      %533 = vmatmul.mubr.f32.gmra.mrb[0].mxu0 %v253
      %v534 = vpop.f32.mrb[0].mxu0
      %v535 = vadd.f32 0.0, %v534
      %v536 = vpop.f32.mrb[0].mxu0
      %537 = vmatprep.mubr.f32.mxu0 0.0
      %538 = vmatmul.mubr.f32.gmra.mrb[0].mxu0 %v256
      %v539 = vpop.f32.mrb[0].mxu0
      %v540 = vadd.f32 0.0, %v539
      %v541 = vpop.f32.mrb[0].mxu0
      %542 = vmatprep.mubr.f32.mxu0 0.0
      %543 = vmatmul.mubr.f32.gmra.mrb[0].mxu0 %v259
      %v544 = vpop.f32.mrb[0].mxu0
      %v545 = vadd.f32 0.0, %v544
      %v546 = vpop.f32.mrb[0].mxu0
      %547 = vmatprep.mubr.f32.mxu0 0.0
      %548 = vmatmul.mubr.f32.gmra.mrb[0].mxu0 %v262
      %v549 = vpop.f32.mrb[0].mxu0
      %v550 = vadd.f32 0.0, %v549
      %v551 = vpop.f32.mrb[0].mxu0
      %552 = vmatprep.mubr.f32.mxu0 0.0
      %553 = vmatmul.mubr.f32.gmra.mrb[0].mxu0 %v265
      %v554 = vpop.f32.mrb[0].mxu0
      %v555 = vadd.f32 0.0, %v554
      %v556 = vpop.f32.mrb[0].mxu0
      %557 = vmatprep.mubr.f32.mxu0 0.0
      %558 = vmatmul.mubr.f32.gmra.mrb[0].mxu0 %v268
      %v559 = vpop.f32.mrb[0].mxu0
      %v560 = vadd.f32 0.0, %v559
      %v561 = vpop.f32.mrb[0].mxu0
      %562 = vmatprep.mubr.f32.mxu0 0.0
      %563 = vmatmul.mubr.f32.gmra.mrb[0].mxu0 %v271
      %v564 = vpop.f32.mrb[0].mxu0
      %v565 = vadd.f32 0.0, %v564
      %v566 = vpop.f32.mrb[0].mxu0
      %567 = vmatprep.mubr.f32.mxu0 0.0
      %568 = vmatmul.mubr.f32.gmra.mrb[0].mxu0 %v274
      %v569 = vpop.f32.mrb[0].mxu0
      %v570 = vadd.f32 0.0, %v569
      %v571 = vpop.f32.mrb[0].mxu0
      %572 = vmatprep.mubr.f32.mxu0 0.0
      %573 = vmatmul.mubr.f32.gmra.mrb[0].mxu0 %v277
      %v574 = vpop.f32.mrb[0].mxu0
      %v575 = vadd.f32 0.0, %v574
      %v576 = vpop.f32.mrb[0].mxu0
      %577 = vmatprep.mubr.f32.mxu0 0.0
      %578 = vmatmul.mubr.f32.gmra.mrb[0].mxu0 %v280
      %v579 = vpop.f32.mrb[0].mxu0
      %v580 = vadd.f32 0.0, %v579
      %v581 = vpop.f32.mrb[0].mxu0
      %582 = vmatprep.mubr.f32.mxu0 0.0
      %583 = vmatmul.mubr.f32.gmra.mrb[0].mxu0 %v283
      %v584 = vpop.f32.mrb[0].mxu0
      %v585 = vadd.f32 0.0, %v584
      %v586 = vpop.f32.mrb[0].mxu0
      %587 = vmatprep.mubr.f32.mxu0 0.0
      %588 = vmatmul.mubr.f32.gmra.mrb[0].mxu0 %v286
      %v589 = vpop.f32.mrb[0].mxu0
      %v590 = vadd.f32 0.0, %v589
      %v591 = vpop.f32.mrb[0].mxu0
      %592 = vmatprep.mubr.f32.mxu0 0.0
      %593 = vmatmul.mubr.f32.gmra.mrb[0].mxu0 %v289
      %v594 = vpop.f32.mrb[0].mxu0
      %v595 = vadd.f32 0.0, %v594
      %v596 = vpop.f32.mrb[0].mxu0
      %597 = vmatprep.mubr.f32.mxu0 0.0
      %598 = vmatmul.mubr.f32.gmra.mrb[0].mxu0 %v292
      %v599 = vpop.f32.mrb[0].mxu0
      %v600 = vadd.f32 0.0, %v599
      %v601 = vpop.f32.mrb[0].mxu0
      %602 = vmatprep.mubr.f32.mxu0 0.0
      %603 = vmatmul.mubr.f32.gmra.mrb[0].mxu0 %v295
      %v604 = vpop.f32.mrb[0].mxu0
      %v605 = vadd.f32 0.0, %v604
      %v606 = vpop.f32.mrb[0].mxu0
      %607 = vmatprep.mubr.f32.mxu0 0.0
      %608 = vmatmul.mubr.f32.gmra.mrb[0].mxu0 %v298
      %v609 = vpop.f32.mrb[0].mxu0
      %v610 = vadd.f32 0.0, %v609
      %v611 = vpop.f32.mrb[0].mxu0
      %612 = vmatprep.mubr.f32.mxu0 0.0
      %613 = vmatmul.mubr.f32.gmra.mrb[0].mxu0 %v301
      %v614 = vpop.f32.mrb[0].mxu0
      %v615 = vadd.f32 0.0, %v614
      %v616 = vpop.f32.mrb[0].mxu0
      %617 = vmatprep.mubr.f32.mxu0 0.0
      %618 = vmatmul.mubr.f32.gmra.mrb[0].mxu0 %v304
      %v619 = vpop.f32.mrb[0].mxu0
      %v620 = vadd.f32 0.0, %v619
      %v621 = vpop.f32.mrb[0].mxu0
      %622 = vmatprep.mubr.f32.mxu0 0.0
      %623 = vmatmul.mubr.f32.gmra.mrb[0].mxu0 %v307
      %v624 = vpop.f32.mrb[0].mxu0
      %v625 = vadd.f32 0.0, %v624
      %v626 = vpop.f32.mrb[0].mxu0
      %627 = vmatprep.mubr.f32.mxu0 0.0
      %628 = vmatmul.mubr.f32.gmra.mrb[0].mxu0 %v310
      %v629 = vpop.f32.mrb[0].mxu0
      %v630 = vadd.f32 0.0, %v629
      %v631 = vpop.f32.mrb[0].mxu0
      %632 = vmatprep.mubr.f32.mxu0 0.0
      %633 = vmatmul.mubr.f32.gmra.mrb[0].mxu0 %v313
      %v634 = vpop.f32.mrb[0].mxu0
      %v635 = vadd.f32 0.0, %v634
      %v636 = vpop.f32.mrb[0].mxu0
      %637 = vmatprep.mubr.f32.mxu0 0.0
      %638 = vmatmul.mubr.f32.gmra.mrb[0].mxu0 %v316
      %v639 = vpop.f32.mrb[0].mxu0
      %v640 = vadd.f32 0.0, %v639
      %v641 = vpop.f32.mrb[0].mxu0
      %642 = vmatprep.mubr.f32.mxu0 0.0
      %643 = vmatmul.mubr.f32.gmra.mrb[0].mxu0 %v319
      %v644 = vpop.f32.mrb[0].mxu0
      %v645 = vadd.f32 0.0, %v644
      %v646 = vpop.f32.mrb[0].mxu0
      %647 = vmatprep.mubr.f32.mxu0 0.0
      %648 = vmatmul.mubr.f32.gmra.mrb[0].mxu0 %v322
      %v649 = vpop.f32.mrb[0].mxu0
      %v650 = vadd.f32 0.0, %v649
      %v651 = vpop.f32.mrb[0].mxu0
      %652 = vmatprep.mubr.f32.mxu0 0.0
      %653 = vmatmul.mubr.f32.gmra.mrb[0].mxu0 %v325
      %v654 = vpop.f32.mrb[0].mxu0
      %v655 = vadd.f32 0.0, %v654
      %v656 = vpop.f32.mrb[0].mxu0
      %657 = vmatprep.mubr.f32.mxu0 0.0
      %658 = vmatmul.mubr.f32.gmra.mrb[0].mxu0 %v328
      %v659 = vpop.f32.mrb[0].mxu0
      %v660 = vadd.f32 0.0, %v659
      %v661 = vpop.f32.mrb[0].mxu0
      %662 = vmatprep.mubr.f32.mxu0 0.0
      %663 = vmatmul.mubr.f32.gmra.mrb[0].mxu0 %v331
      %v664 = vpop.f32.mrb[0].mxu0
      %v665 = vadd.f32 0.0, %v664
      %v666 = vpop.f32.mrb[0].mxu0
      %667 = vmatprep.mubr.f32.mxu0 0.0
      %668 = vmatmul.mubr.f32.gmra.mrb[0].mxu0 %v334
      %v669 = vpop.f32.mrb[0].mxu0
      %v670 = vadd.f32 0.0, %v669
      %v671 = vpop.f32.mrb[0].mxu0
      %672 = vmatprep.mubr.f32.mxu0 0.0
      %673 = vmatmul.mubr.f32.gmra.mrb[0].mxu0 %v337
      %v674 = vpop.f32.mrb[0].mxu0
      %v675 = vadd.f32 0.0, %v674
      %v676 = vpop.f32.mrb[0].mxu0
      %677 = vmatprep.mubr.f32.mxu0 0.0
      %678 = vmatmul.mubr.f32.gmra.mrb[0].mxu0 %v340
      %v679 = vpop.f32.mrb[0].mxu0
      %v680 = vadd.f32 0.0, %v679
      %v681 = vpop.f32.mrb[0].mxu0
      %682 = vmatprep.mubr.f32.mxu0 0.0
      %683 = vmatmul.mubr.f32.gmra.mrb[0].mxu0 %v343
      %v684 = vpop.f32.mrb[0].mxu0
      %v685 = vadd.f32 0.0, %v684
      %v686 = vpop.f32.mrb[0].mxu0
      %687 = vmatprep.mubr.f32.mxu0 0.0
      %688 = vmatmul.mubr.f32.gmra.mrb[0].mxu0 %v346
      %v689 = vpop.f32.mrb[0].mxu0
      %v690 = vadd.f32 0.0, %v689
      %v691 = vpop.f32.mrb[0].mxu0
      %692 = vmatprep.mubr.f32.mxu0 0.0
      %693 = vmatmul.mubr.f32.gmra.mrb[0].mxu0 %v349
      %v694 = vpop.f32.mrb[0].mxu0
      %v695 = vadd.f32 0.0, %v694
      %v696 = vpop.f32.mrb[0].mxu0
      %697 = vmatprep.mubr.f32.mxu0 0.0
      %698 = vmatmul.mubr.f32.gmra.mrb[0].mxu0 %v352
      %v699 = vpop.f32.mrb[0].mxu0
      %v700 = vadd.f32 0.0, %v699
      %v701 = vpop.f32.mrb[0].mxu0
      %702 = vmatprep.mubr.f32.mxu0 0.0
      %703 = vmatmul.mubr.f32.gmra.mrb[0].mxu0 %v355
      %v704 = vpop.f32.mrb[0].mxu0
      %v705 = vadd.f32 0.0, %v704
      %v706 = vpop.f32.mrb[0].mxu0
      %707 = vmatprep.mubr.f32.mxu0 0.0
      %708 = vmatmul.mubr.f32.gmra.mrb[0].mxu0 %v358
      %v709 = vpop.f32.mrb[0].mxu0
      %v710 = vadd.f32 0.0, %v709
      %v711 = vpop.f32.mrb[0].mxu0
      %712 = vmatprep.mubr.f32.mxu0 0.0
      %713 = vmatmul.mubr.f32.gmra.mrb[0].mxu0 %v361
      %v714 = vpop.f32.mrb[0].mxu0
      %v715 = vadd.f32 0.0, %v714
      %v716 = vpop.f32.mrb[0].mxu0
      %717 = vmatprep.mubr.f32.mxu0 0.0
      %718 = vmatmul.mubr.f32.gmra.mrb[0].mxu0 %v364
      %v719 = vpop.f32.mrb[0].mxu0
      %v720 = vadd.f32 0.0, %v719
      %v721 = vpop.f32.mrb[0].mxu0
      %722 = vmatprep.mubr.f32.mxu0 0.0
      %723 = vmatmul.mubr.f32.gmra.mrb[0].mxu0 %v367
      %v724 = vpop.f32.mrb[0].mxu0
      %v725 = vadd.f32 0.0, %v724
      %v726 = vpop.f32.mrb[0].mxu0
      %727 = vmatprep.mubr.f32.mxu0 0.0
      %728 = vmatmul.mubr.f32.gmra.mrb[0].mxu0 %v370
      %v729 = vpop.f32.mrb[0].mxu0
      %v730 = vadd.f32 0.0, %v729
      %v731 = vpop.f32.mrb[0].mxu0
      %732 = vmatprep.mubr.f32.mxu0 0.0
      %733 = vmatmul.mubr.f32.gmra.mrb[0].mxu0 %v373
      %v734 = vpop.f32.mrb[0].mxu0
      %v735 = vadd.f32 0.0, %v734
      %v736 = vpop.f32.mrb[0].mxu0
      %737 = vmatprep.mubr.f32.mxu0 0.0
      %738 = vmatmul.mubr.f32.gmra.mrb[0].mxu0 %v376
      %v739 = vpop.f32.mrb[0].mxu0
      %v740 = vadd.f32 0.0, %v739
      %v741 = vpop.f32.mrb[0].mxu0
      %742 = vmatprep.mubr.f32.mxu0 0.0
      %743 = vmatmul.mubr.f32.gmra.mrb[0].mxu0 %v379
      %v744 = vpop.f32.mrb[0].mxu0
      %v745 = vadd.f32 0.0, %v744
      %v746 = vpop.f32.mrb[0].mxu0
      %747 = vmatprep.mubr.f32.mxu0 0.0
      %748 = vmatmul.mubr.f32.gmra.mrb[0].mxu0 %v382
      %v749 = vpop.f32.mrb[0].mxu0
      %v750 = vadd.f32 0.0, %v749
      %v751 = vpop.f32.mrb[0].mxu0
      %752 = vmatprep.mubr.f32.mxu0 0.0
      %753 = vmatmul.mubr.f32.gmra.mrb[0].mxu0 %v385
      %v754 = vpop.f32.mrb[0].mxu0
      %v755 = vadd.f32 0.0, %v754
      %v756 = vpop.f32.mrb[0].mxu0
      %757 = vmatprep.mubr.f32.mxu0 0.0
      %758 = vmatmul.mubr.f32.gmra.mrb[0].mxu0 %v388
      %v759 = vpop.f32.mrb[0].mxu0
      %v760 = vadd.f32 0.0, %v759
      %v761 = vpop.f32.mrb[0].mxu0
      %762 = vmatprep.mubr.f32.mxu0 0.0
      %763 = vmatmul.mubr.f32.gmra.mrb[0].mxu0 %v391
      %v764 = vpop.f32.mrb[0].mxu0
      %v765 = vadd.f32 0.0, %v764
      %v766 = vpop.f32.mrb[0].mxu0
      %767 = vmatprep.mubr.f32.mxu0 0.0
      %768 = vmatmul.mubr.f32.gmra.mrb[0].mxu0 %v394
      %v769 = vpop.f32.mrb[0].mxu0
      %v770 = vadd.f32 0.0, %v769
      %v771 = vpop.f32.mrb[0].mxu0
      %772 = vmatprep.mubr.f32.mxu0 0.0
      %773 = vmatmul.mubr.f32.gmra.mrb[0].mxu0 %v397
      %v774 = vpop.f32.mrb[0].mxu0
      %v775 = vadd.f32 0.0, %v774
      %v776 = vpop.f32.mrb[0].mxu0
      %777 = vmatprep.mubr.f32.mxu0 0.0
      %778 = vmatmul.mubr.f32.gmra.mrb[0].mxu0 %v400
      %v779 = vpop.f32.mrb[0].mxu0
      %v780 = vadd.f32 0.0, %v779
      %v781 = vpop.f32.mrb[0].mxu0
      %782 = vmatprep.mubr.f32.mxu0 0.0
      %783 = vmatmul.mubr.f32.gmra.mrb[0].mxu0 %v403
      %v784 = vpop.f32.mrb[0].mxu0
      %v785 = vadd.f32 0.0, %v784
      %v786 = vpop.f32.mrb[0].mxu0
      %787 = vmatprep.mubr.f32.mxu0 0.0
      %788 = vmatmul.mubr.f32.gmra.mrb[0].mxu0 %v406
      %v789 = vpop.f32.mrb[0].mxu0
      %v790 = vadd.f32 0.0, %v789
      %v791 = vpop.f32.mrb[0].mxu0
      %792 = vdwg.mxu0
      %vm793 = vcmask 130048
      %794 = vst.msk [vmem:[%s145] sm:$0xff] %vm793, %v475
      %795 = vst.msk [vmem:[%s145 + $0x8] sm:$0xff] %vm793, %v480
      %796 = vst.msk [vmem:[%s145 + $0x10] sm:$0xff] %vm793, %v485
      %797 = vst.msk [vmem:[%s145 + $0x18] sm:$0xff] %vm793, %v490
      %798 = vst.msk [vmem:[%s145 + $0x20] sm:$0xff] %vm793, %v495
      %799 = vst.msk [vmem:[%s145 + $0x28] sm:$0xff] %vm793, %v500
      %800 = vst.msk [vmem:[%s145 + $0x30] sm:$0xff] %vm793, %v505
      %801 = vst.msk [vmem:[%s145 + $0x38] sm:$0xff] %vm793, %v510
      %802 = vst.msk [vmem:[%s145 + $0x40] sm:$0xff] %vm793, %v515
      %803 = vst.msk [vmem:[%s145 + $0x48] sm:$0xff] %vm793, %v520
      %804 = vst.msk [vmem:[%s145 + $0x50] sm:$0xff] %vm793, %v525
      %805 = vst.msk [vmem:[%s145 + $0x58] sm:$0xff] %vm793, %v530
      %806 = vst.msk [vmem:[%s145 + $0x60] sm:$0xff] %vm793, %v535
      %807 = vst.msk [vmem:[%s145 + $0x68] sm:$0xff] %vm793, %v540
      %808 = vst.msk [vmem:[%s145 + $0x70] sm:$0xff] %vm793, %v545
      %809 = vst.msk [vmem:[%s145 + $0x78] sm:$0xff] %vm793, %v550
      %810 = vst.msk [vmem:[%s145 + $0x80] sm:$0xff] %vm793, %v555
      %811 = vst.msk [vmem:[%s145 + $0x88] sm:$0xff] %vm793, %v560
      %812 = vst.msk [vmem:[%s145 + $0x90] sm:$0xff] %vm793, %v565
      %813 = vst.msk [vmem:[%s145 + $0x98] sm:$0xff] %vm793, %v570
      %814 = vst.msk [vmem:[%s145 + $0xa0] sm:$0xff] %vm793, %v575
      %815 = vst.msk [vmem:[%s145 + $0xa8] sm:$0xff] %vm793, %v580
      %816 = vst.msk [vmem:[%s145 + $0xb0] sm:$0xff] %vm793, %v585
      %817 = vst.msk [vmem:[%s145 + $0xb8] sm:$0xff] %vm793, %v590
      %818 = vst.msk [vmem:[%s145 + $0xc0] sm:$0xff] %vm793, %v595
      %819 = vst.msk [vmem:[%s145 + $0xc8] sm:$0xff] %vm793, %v600
      %820 = vst.msk [vmem:[%s145 + $0xd0] sm:$0xff] %vm793, %v605
      %821 = vst.msk [vmem:[%s145 + $0xd8] sm:$0xff] %vm793, %v610
      %822 = vst.msk [vmem:[%s145 + $0xe0] sm:$0xff] %vm793, %v615
      %823 = vst.msk [vmem:[%s145 + $0xe8] sm:$0xff] %vm793, %v620
      %824 = vst.msk [vmem:[%s145 + $0xf0] sm:$0xff] %vm793, %v625
      %825 = vst.msk [vmem:[%s145 + $0xf8] sm:$0xff] %vm793, %v630
      %826 = vst.msk [vmem:[%s145 + $0x100] sm:$0xff] %vm793, %v635
      %827 = vst.msk [vmem:[%s145 + $0x108] sm:$0xff] %vm793, %v640
      %828 = vst.msk [vmem:[%s145 + $0x110] sm:$0xff] %vm793, %v645
      %829 = vst.msk [vmem:[%s145 + $0x118] sm:$0xff] %vm793, %v650
      %830 = vst.msk [vmem:[%s145 + $0x120] sm:$0xff] %vm793, %v655
      %831 = vst.msk [vmem:[%s145 + $0x128] sm:$0xff] %vm793, %v660
      %832 = vst.msk [vmem:[%s145 + $0x130] sm:$0xff] %vm793, %v665
      %833 = vst.msk [vmem:[%s145 + $0x138] sm:$0xff] %vm793, %v670
      %834 = vst.msk [vmem:[%s145 + $0x140] sm:$0xff] %vm793, %v675
      %835 = vst.msk [vmem:[%s145 + $0x148] sm:$0xff] %vm793, %v680
      %836 = vst.msk [vmem:[%s145 + $0x150] sm:$0xff] %vm793, %v685
      %837 = vst.msk [vmem:[%s145 + $0x158] sm:$0xff] %vm793, %v690
      %838 = vst.msk [vmem:[%s145 + $0x160] sm:$0xff] %vm793, %v695
      %839 = vst.msk [vmem:[%s145 + $0x168] sm:$0xff] %vm793, %v700
      %840 = vst.msk [vmem:[%s145 + $0x170] sm:$0xff] %vm793, %v705
      %841 = vst.msk [vmem:[%s145 + $0x178] sm:$0xff] %vm793, %v710
      %842 = vst.msk [vmem:[%s145 + $0x180] sm:$0xff] %vm793, %v715
      %843 = vst.msk [vmem:[%s145 + $0x188] sm:$0xff] %vm793, %v720
      %844 = vst.msk [vmem:[%s145 + $0x190] sm:$0xff] %vm793, %v725
      %845 = vst.msk [vmem:[%s145 + $0x198] sm:$0xff] %vm793, %v730
      %846 = vst.msk [vmem:[%s145 + $0x1a0] sm:$0xff] %vm793, %v735
      %847 = vst.msk [vmem:[%s145 + $0x1a8] sm:$0xff] %vm793, %v740
      %848 = vst.msk [vmem:[%s145 + $0x1b0] sm:$0xff] %vm793, %v745
      %849 = vst.msk [vmem:[%s145 + $0x1b8] sm:$0xff] %vm793, %v750
      %850 = vst.msk [vmem:[%s145 + $0x1c0] sm:$0xff] %vm793, %v755
      %851 = vst.msk [vmem:[%s145 + $0x1c8] sm:$0xff] %vm793, %v760
      %852 = vst.msk [vmem:[%s145 + $0x1d0] sm:$0xff] %vm793, %v765
      %853 = vst.msk [vmem:[%s145 + $0x1d8] sm:$0xff] %vm793, %v770
      %854 = vst.msk [vmem:[%s145 + $0x1e0] sm:$0xff] %vm793, %v775
      %855 = vst.msk [vmem:[%s145 + $0x1e8] sm:$0xff] %vm793, %v780
      %856 = vst.msk [vmem:[%s145 + $0x1f0] sm:$0xff] %vm793, %v785
      %857 = vst.msk [vmem:[%s145 + $0x1f8] sm:$0xff] %vm793, %v790
      %s858 = smul.u32 64, %s13
      %p859 = scmp.lt.s32.totalorder %s858, 127
      %s860 = scalar_select %p859, %s858, 127
      %s861 = smul.addr %s860, 8
      %s862 = scalar_lea.vmem %s2, %s861
      // Predicated region
      $region29: #{toy_model_forward.1} parent=27 // pred_check
        %p863 = pneg %p78
      $region30: #{toy_model_forward.1} parent=27 // pred_check_branch
        %865 = sbr.rel (%p863) target = $region32
      $region31: #{toy_model_forward.1} parent=27 // pred_region
        %s866 = smul.u32 64, %s13
      $region32: #{toy_model_forward.1} parent=27 // pred_fallthru
        _
    $region28: #{toy_model_forward.1} parent=5 // pred_fallthru
      _
    %p867 = scmp.le.s32.totalorder 2, %s8
    // Predicated region
    $region33: #{toy_model_forward.1} parent=5 // pred_check
      %p868 = pneg %p867
    $region34: #{toy_model_forward.1} parent=5 // pred_check_branch
      %870 = sbr.rel (%p868) target = $region36
    $region35: #{toy_model_forward.1} parent=5 // pred_region
      %s871 = ssub.s32 %s8, 2
      // Predicated region
      $region37: #{toy_model_forward.1} parent=35 // pred_check
        %p872 = pneg %p84
      $region38: #{toy_model_forward.1} parent=35 // pred_check_branch
        %874 = sbr.rel (%p872) target = $region40
      $region39: #{toy_model_forward.1} parent=35 // pred_region
        %s875 = smul.u32 64, %s14
        %p876 = scmp.lt.s32.totalorder %s875, 127
        %s877 = scalar_select %p876, %s875, 127
        %s878 = smul.addr %s877, 8
        %s879 = scalar_lea.vmem %s2, %s878
      $region40: #{toy_model_forward.1} parent=35 // pred_fallthru
        _
    $region36: #{toy_model_forward.1} parent=5 // pred_fallthru
      _
  $region6: #{toy_model_forward.1} parent=0 // loop_footer
    %s12 = sadd.s32 1, %s8
  $region7: #{toy_model_forward.1} parent=0 // loop_footer_branch
    %7 = sbr.rel target = $region3
  $region8: #{toy_model_forward.1} parent=0 // loop_exit
    _

</llo_original>
